<compile_context>
chip_gen: v5e
topology: v5e:2x2
jax: 0.10.0
libtpu: 0.0.40
codegen_flags: <defaults>
</compile_context>

<pallas_src>
import functools

import jax
import jax.numpy as jnp
from jax.experimental import pallas as pl
from jax.experimental.pallas import tpu as pltpu


def _dma_copy_kernel(x_hbm, o_hbm, sems, *, rows_per_step, chunks):
    """Direct HBM->HBM copy of this grid step's row range.

    `chunks` is a static tuple of (row_offset_within_step, num_rows).
    All chunk DMAs are started before any wait so they overlap.
    """
    base = pl.program_id(0) * rows_per_step
    copies = []
    for c, (off, sz) in enumerate(chunks):
        start = base + off
        cp = pltpu.make_async_copy(
            x_hbm.at[pl.ds(start, sz)],
            o_hbm.at[pl.ds(start, sz)],
            sems.at[c],
        )
        cp.start()
        copies.append(cp)
    for cp in copies:
        cp.wait()


def unflatten(x, n_channels, size1, size2, *,
              max_chunks_per_step=8,
              target_chunk_bytes=4 * 1024 * 1024):
    """x: (B, n_channels*size1*size2) -> (B, n_channels, size1, size2)."""
    B, F = x.shape
    assert F == n_channels * size1 * size2, "flat dim mismatch"

    itemsize = jnp.dtype(x.dtype).itemsize
    bytes_per_row = F * itemsize

    # Two "parallel" grid steps when the row axis splits evenly -> v7x's two
    # TensorCores each stream half the rows; otherwise a single step.
    grid_steps = 2 if (B >= 2 and B % 2 == 0) else 1
    rows_per_step = B // grid_steps

    # Static per-step chunk plan: ~target_chunk_bytes per DMA, at most
    # max_chunks_per_step overlapping copies (bigger chunks if capped).
    chunk_rows = max(1, target_chunk_bytes // max(1, bytes_per_row))
    n_chunks = max(1, min(max_chunks_per_step, pl.cdiv(rows_per_step, chunk_rows)))
    chunk_rows = pl.cdiv(rows_per_step, n_chunks)
    chunks = []
    off = 0
    while off < rows_per_step:
        sz = min(chunk_rows, rows_per_step - off)
        chunks.append((off, sz))
        off += sz
    chunks = tuple(chunks)

    kernel = functools.partial(
        _dma_copy_kernel, rows_per_step=rows_per_step, chunks=chunks)

    out_2d = pl.pallas_call(
        kernel,
        out_shape=jax.ShapeDtypeStruct((B, F), x.dtype),
        grid_spec=pltpu.PrefetchScalarGridSpec(
            num_scalar_prefetch=0,
            grid=(grid_steps,),
            in_specs=[pl.BlockSpec(memory_space=pl.ANY)],   # raw HBM ref
            out_specs=pl.BlockSpec(memory_space=pl.ANY),    # raw HBM ref
            scratch_shapes=[pltpu.SemaphoreType.DMA((len(chunks),))],
        ),
        compiler_params=pltpu.CompilerParams(
            dimension_semantics=("parallel",),
            has_side_effects=True,
        ),
        cost_estimate=pl.CostEstimate(
            flops=0,
            transcendentals=0,
            bytes_accessed=2 * B * F * itemsize,
        ),
    )(x)

    # Metadata-only 4-D view, identical to torch .view on contiguous input.
    return out_2d.reshape(B, n_channels, size1, size2)


if __name__ == "__main__":
    key = jax.random.PRNGKey(0)
    C, H, W = 4, 16, 16

    # Case 1: module-sized input (B=2): grid_steps=2, one DMA chunk per step.
    B1 = 2
    x1 = jax.random.normal(key, (B1, C * H * W), dtype=jnp.float32)
    y1 = jax.block_until_ready(unflatten(x1, C, H, W))
    assert y1.shape == (B1, C, H, W), y1.shape
    assert y1.dtype == x1.dtype
    assert jnp.array_equal(y1, x1.reshape(B1, C, H, W)), "mismatch (case 1)"

    # Case 2: odd batch (grid_steps=1), bf16, tiny chunk target to exercise
    # several overlapping DMAs with a ragged static tail chunk.
    B2 = 5
    x2 = jax.random.normal(key, (B2, C * H * W), dtype=jnp.bfloat16)
    y2 = jax.block_until_ready(
        unflatten(x2, C, H, W, target_chunk_bytes=4 * 1024))
    assert jnp.array_equal(y2, x2.reshape(B2, C, H, W)), "mismatch (case 2)"

    # Case 3: even batch (grid_steps=2) with multi-chunk per step, so the
    # dynamic program_id row base and overlapped chunking are both exercised.
    B3 = 16
    x3 = jax.random.normal(key, (B3, C * H * W), dtype=jnp.float32)
    y3 = jax.block_until_ready(
        unflatten(x3, C, H, W, target_chunk_bytes=8 * 1024))
    assert jnp.array_equal(y3, x3.reshape(B3, C, H, W)), "mismatch (case 3)"

    print("KERNEL_OK")
</pallas_src>

<mosaic_0001>
module attributes {stable_mosaic.version = 11 : i64} {
  func.func @_dma_copy_kernel(%arg0: i32, %arg1: memref<2x1024xf32, #tpu.memory_space<any>>, %arg2: memref<2x1024xf32, #tpu.memory_space<any>>, %arg3: memref<1x!tpu.dma_semaphore, #tpu.memory_space<semaphore_mem>>) attributes {dimension_semantics = [#tpu.dimension_semantics<parallel>], iteration_bounds = array<i64: 2>, scalar_prefetch = 0 : i64, scratch_operands = 1 : i64, tpu.core_type = #tpu.core_type<tc>, window_params = [{}, {}]} {
    %c1_i32 = arith.constant 1 : i32
    %0 = arith.muli %arg0, %c1_i32 : i32
    %c0_i32 = arith.constant 0 : i32
    %1 = arith.addi %0, %c0_i32 : i32
    %c0_i32_0 = arith.constant 0 : i32
    %c0_i32_1 = arith.constant 0 : i32
    %2 = tpu.memref_slice %arg1[%1, %c0_i32_1] : memref<2x1024xf32, #tpu.memory_space<any>> -> memref<1x1024xf32, #tpu.memory_space<any>>
    %c0_i32_2 = arith.constant 0 : i32
    %3 = tpu.memref_slice %arg2[%1, %c0_i32_2] : memref<2x1024xf32, #tpu.memory_space<any>> -> memref<1x1024xf32, #tpu.memory_space<any>>
    %4 = tpu.memref_slice %arg3[%c0_i32_0] : memref<1x!tpu.dma_semaphore, #tpu.memory_space<semaphore_mem>> -> memref<1x!tpu.dma_semaphore, #tpu.memory_space<semaphore_mem>>
    %5 = tpu.memref_squeeze %4 : memref<1x!tpu.dma_semaphore, #tpu.memory_space<semaphore_mem>> -> memref<!tpu.dma_semaphore, #tpu.memory_space<semaphore_mem>>
    tpu.enqueue_dma source(%2 : memref<1x1024xf32, #tpu.memory_space<any>>) target(%3 : memref<1x1024xf32, #tpu.memory_space<any>>) target_semaphore(%5 : memref<!tpu.dma_semaphore, #tpu.memory_space<semaphore_mem>>)
    %c0_i32_3 = arith.constant 0 : i32
    %c0_i32_4 = arith.constant 0 : i32
    %6 = tpu.memref_slice %arg1[%1, %c0_i32_4] : memref<2x1024xf32, #tpu.memory_space<any>> -> memref<1x1024xf32, #tpu.memory_space<any>>
    %c0_i32_5 = arith.constant 0 : i32
    %7 = tpu.memref_slice %arg2[%1, %c0_i32_5] : memref<2x1024xf32, #tpu.memory_space<any>> -> memref<1x1024xf32, #tpu.memory_space<any>>
    %8 = tpu.memref_slice %arg3[%c0_i32_3] : memref<1x!tpu.dma_semaphore, #tpu.memory_space<semaphore_mem>> -> memref<1x!tpu.dma_semaphore, #tpu.memory_space<semaphore_mem>>
    %9 = tpu.memref_squeeze %8 : memref<1x!tpu.dma_semaphore, #tpu.memory_space<semaphore_mem>> -> memref<!tpu.dma_semaphore, #tpu.memory_space<semaphore_mem>>
    tpu.wait_dma2 semaphore(%9 : memref<!tpu.dma_semaphore, #tpu.memory_space<semaphore_mem>>) src(%6 : memref<1x1024xf32, #tpu.memory_space<any>>) dst(%7 : memref<1x1024xf32, #tpu.memory_space<any>>)
    return
  }
}

</mosaic_0001>

<llo_original>
// kernel: tpu_custom_call.1
$region0: #{tpu_custom_call.1}
  #allocation0 [shape = 'u32[]', space=smem, size = 0x4, offset = 0x4, fixed_abs, tag = 'smem constant byte address 0x4 - core index']
  #allocation1 [shape = 'u32[72,128]{1,0:T(1,128)}', space=vmem, size = 0x9000, scoped, tag = 'internal scratch']
  #allocation2 [shape = 's32[1]{0}', space=sflag, size = 0x4, scoped, tag = 'scratch operand']
  #allocation3 [shape = 's32[]', space=sflag, size = 0x4, offset = 0, fixed_abs, tag = 'sflag constant byte address 0x0 - dummy sync flag']
  %s0 = inlined_call_operand.hbm [shape: f32[2,1024], index: 0, kind: input, shape index: {}]
  %s1 = inlined_call_operand.hbm [shape: f32[2,1024], index: 1, kind: output, shape index: {}]
  %s2 = sld [smem:[#allocation0]]
  $region9: #{tpu_custom_call.1} parent=0
    _
  %s4 = ssub.s32 1, %s2
  %s5 = scalar_select 0, %s4, %s2
  loop: start=0, step=1, limit=2
  $region2: #{tpu_custom_call.1} parent=0 // loop_pre_header
    _
  $region3: #{tpu_custom_call.1} parent=0 // loop_header
    %s7 = sphi 0, %s11
    %p8 = scmp.ge.s32.totalorder %s7, 2
  $region4: #{tpu_custom_call.1} parent=0 // loop_header_branch
    %10 = sbr.rel (%p8) target = $region8
  $region5: #{tpu_custom_call.1} parent=0 // loop_body
    #allocation4 [shape = 'u32[3]{0}', space=smem, size = 0xc, scoped, tag = 'DMA stride descriptor']
    %s12 = sadd.s32 %s7, 1
    %s13 = sshrl.u32 %s7, 1
    %s14 = sand.u32 %s7, 1
    %s15 = smul.u32 %s13, 16
    %s16 = sadd.s32 %s14, %s15
    %s17 = scalar_lea.hbm %s0, %s16
    %s18 = scalar_lea.hbm %s1, %s16
    %s20 = sshll.u32 1, 14
    %s21 = sxor.u32 4294967295, %s20
    %s23 = sshll.u32 %s17, 4
    %s24 = int_to_ptr.hbm [resolvable:$true] %s23
    %s25 = sshll.u32 %s18, 4
    %s26 = int_to_ptr.hbm [resolvable:$true] %s25
    %30 = sst [smem:[#allocation4]] 32
    %s31 = scalar_lea.smem [#allocation4], 1
    %32 = sst [smem:[%s31]] 32
    %s33 = scalar_lea.smem [#allocation4], 2
    %34 = sst [smem:[%s33]] 1
    %36 = dma.general %s24, 128, %s26, [#allocation2], [#allocation3], [#allocation4], 0, 0
    %s37 = smul.u32 1, 8
    %s38 = sshll.u32 %s37, 4
    %39 = dma.done [#allocation2], %s38
  $region6: #{tpu_custom_call.1} parent=0 // loop_footer
    %s11 = sadd.s32 1, %s7
  $region7: #{tpu_custom_call.1} parent=0 // loop_footer_branch
    %6 = sbr.rel target = $region3
  $region8: #{tpu_custom_call.1} parent=0 // loop_exit
    _
  %40 = vsyncmov [#allocation2]
  %s41 = vpop.sfrf %40
  %p42 = scmp.eq.s32.totalorder %s41, 0
  %p43 = pneg %p42
  %45 = shalt.err (%p43)

</llo_original>
